<compile_context>
chip_gen: v7x
topology: tpu7x:2x2x1
jax: 0.10.0
libtpu: 0.0.40
codegen_flags: <defaults>
</compile_context>

<pallas_src>
import functools
import math

import jax
import jax.numpy as jnp
from jax import lax
from jax.experimental import pallas as pl
from jax.experimental.pallas import tpu as pltpu


# Keep resident weights well under v7x's 64 MiB physical VMEM (double-buffered
# allocation + activations + output tiles also live there).
_WEIGHT_RESIDENT_BUDGET = 12 * 1024 * 1024          # bytes
_DENSE_VMEM_LIMIT = 48 * 1024 * 1024                # bytes (ok on v5e/v6e/v7x)


# ----------------------------------------------------------------------------
# helpers
# ----------------------------------------------------------------------------
def _tile(dim, prefs):
    """Largest preferred tile that divides `dim`, else the full dim."""
    for t in prefs:
        if dim % t == 0:
            return t
    return dim


def _tile_m(m):
    # big row tiles: fewer grid steps, longer uninterrupted MXU LHS streams
    return _tile(m, (512, 256, 128, 64, 32, 16, 8))


def _tile_n_for_weight(n, k, itemsize):
    """Full-N (weight-resident) when the weight fits the budget, else tiled."""
    if k * n * itemsize <= _WEIGHT_RESIDENT_BUDGET:
        return n
    return _tile(n, (1024, 512, 256, 128))


# ----------------------------------------------------------------------------
# dense: y = act(x @ w + b)
# Weight-resident: tk = K (full), tn = N when it fits -> the weight block
# index is constant across the (row-major) grid, so it is DMA'd once.
# No accumulator scratch (single K step): compute + epilogue + store directly.
# ----------------------------------------------------------------------------
def _dense_kernel(x_ref, w_ref, b_ref, o_ref, *, act):
    y = jnp.dot(x_ref[...], w_ref[...], preferred_element_type=jnp.float32)
    y = y + b_ref[...]
    if act == "relu":
        y = jnp.maximum(y, 0.0)
    elif act == "tanh":
        y = jnp.tanh(y)
    elif act == "gelu":
        # TODO(synk): exact erf-based GELU (HF default); tanh approx kept for
        # Mosaic-lowering safety — numeric drift is tiny.
        y = 0.5 * y * (1.0 + jnp.tanh(
            0.7978845608028654 * (y + 0.044715 * y * y * y)))
    o_ref[...] = y.astype(o_ref.dtype)


def dense(x, w, b, act="none", out_dtype=jnp.bfloat16):
    M, K = x.shape
    _, N = w.shape
    tm = _tile_m(M)
    tn = _tile_n_for_weight(N, K, w.dtype.itemsize)
    grid = (M // tm, N // tn)                      # N axis has extent 1 when
    return pl.pallas_call(                         # the weight is resident
        functools.partial(_dense_kernel, act=act),
        out_shape=jax.ShapeDtypeStruct((M, N), out_dtype),
        grid=grid,
        in_specs=[
            pl.BlockSpec((tm, K), lambda i, j: (i, 0)),
            pl.BlockSpec((K, tn), lambda i, j: (0, j)),    # constant -> 1 DMA
            pl.BlockSpec((1, tn), lambda i, j: (0, j)),
        ],
        out_specs=pl.BlockSpec((tm, tn), lambda i, j: (i, j)),
        compiler_params=pltpu.CompilerParams(
            dimension_semantics=("parallel", "parallel"),
            vmem_limit_bytes=_DENSE_VMEM_LIMIT),
    )(x, w, b.reshape(1, N))


# ----------------------------------------------------------------------------
# dense + residual + LayerNorm fused:  out = LN(x @ w + b + res) * g + beta
# Full N per row block (LN reduce stays in-kernel) and full K (weight-resident
# even for the FFN-down K=1536) -> single-axis grid over M, no scratch.
# ----------------------------------------------------------------------------
def _dense_ln_kernel(x_ref, w_ref, b_ref, r_ref, g_ref, bt_ref, o_ref, *, eps):
    h = jnp.dot(x_ref[...], w_ref[...], preferred_element_type=jnp.float32)
    h = h + b_ref[...] + r_ref[...].astype(jnp.float32)
    mu = jnp.mean(h, axis=-1, keepdims=True)
    var = jnp.mean((h - mu) * (h - mu), axis=-1, keepdims=True)
    inv = lax.rsqrt(var + eps)
    o_ref[...] = ((h - mu) * inv * g_ref[...] + bt_ref[...]).astype(o_ref.dtype)


def dense_add_layernorm(x, w, b, res, gamma, beta, eps=1e-12,
                        out_dtype=jnp.bfloat16):
    M, K = x.shape
    _, N = w.shape
    tm = _tile_m(M)
    grid = (M // tm,)
    return pl.pallas_call(
        functools.partial(_dense_ln_kernel, eps=eps),
        out_shape=jax.ShapeDtypeStruct((M, N), out_dtype),
        grid=grid,
        in_specs=[
            pl.BlockSpec((tm, K), lambda i: (i, 0)),
            pl.BlockSpec((K, N), lambda i: (0, 0)),        # constant -> 1 DMA
            pl.BlockSpec((1, N), lambda i: (0, 0)),
            pl.BlockSpec((tm, N), lambda i: (i, 0)),
            pl.BlockSpec((1, N), lambda i: (0, 0)),
            pl.BlockSpec((1, N), lambda i: (0, 0)),
        ],
        out_specs=pl.BlockSpec((tm, N), lambda i: (i, 0)),
        compiler_params=pltpu.CompilerParams(
            dimension_semantics=("parallel",),
            vmem_limit_bytes=_DENSE_VMEM_LIMIT),
    )(x, w, b.reshape(1, N), res, gamma.reshape(1, N), beta.reshape(1, N))


# ----------------------------------------------------------------------------
# plain LayerNorm (embeddings) — no residual, tiled over rows, bf16 in/out
# ----------------------------------------------------------------------------
def _ln_kernel(x_ref, g_ref, b_ref, o_ref, *, eps):
    h = x_ref[...].astype(jnp.float32)
    mu = jnp.mean(h, axis=-1, keepdims=True)
    var = jnp.mean((h - mu) * (h - mu), axis=-1, keepdims=True)
    inv = lax.rsqrt(var + eps)
    o_ref[...] = ((h - mu) * inv * g_ref[...] + b_ref[...]).astype(o_ref.dtype)


def layernorm(x, gamma, beta, eps=1e-12, out_dtype=jnp.bfloat16):
    M, N = x.shape
    tm = _tile_m(M)
    return pl.pallas_call(
        functools.partial(_ln_kernel, eps=eps),
        out_shape=jax.ShapeDtypeStruct((M, N), out_dtype),
        grid=(M // tm,),
        in_specs=[
            pl.BlockSpec((tm, N), lambda i: (i, 0)),
            pl.BlockSpec((1, N), lambda i: (0, 0)),
            pl.BlockSpec((1, N), lambda i: (0, 0)),
        ],
        out_specs=pl.BlockSpec((tm, N), lambda i: (i, 0)),
        compiler_params=pltpu.CompilerParams(
            dimension_semantics=("parallel",)),
    )(x, gamma.reshape(1, N), beta.reshape(1, N))


# ----------------------------------------------------------------------------
# attention over the fused QKV activation (B*S, 3H), gridded over batch only.
# All 12 heads are processed per grid step (unrolled), so per-step overhead is
# amortized and the Q/K/V DMAs are lane-dense (S, 768) blocks.  Head split is
# static column slicing of the loaded block; head merge is per-head sliced
# stores into o_ref (no concatenate temp).  The additive mask bias is built
# in-kernel from the tiny (1, S) mask row selected purely by BlockSpec.
# ----------------------------------------------------------------------------
def _attention_kernel(mask_ref, q_ref, k_ref, v_ref, o_ref, *, scale, heads, dh):
    bias = (1.0 - mask_ref[...]) * -1e4                    # (1, S) f32
    q = q_ref[...]                                         # (S, H) bf16
    k = k_ref[...]
    v = v_ref[...]
    for u in range(heads):                                 # unrolled head loop
        lo, hi = u * dh, (u + 1) * dh
        qh, kh, vh = q[:, lo:hi], k[:, lo:hi], v[:, lo:hi]
        s = lax.dot_general(qh, kh, (((1,), (1,)), ((), ())),
                            preferred_element_type=jnp.float32) * scale
        s = s + bias                                       # (S, S) + (1, S)
        m = jnp.max(s, axis=-1, keepdims=True)
        p = jnp.exp(s - m)
        p = p * pl.reciprocal(jnp.sum(p, axis=-1, keepdims=True), approx=True)
        ctx = jnp.dot(p.astype(vh.dtype), vh,
                      preferred_element_type=jnp.float32)
        o_ref[:, lo:hi] = ctx.astype(o_ref.dtype)          # sliced store


def attention(qkv, maskf, *, heads, head_dim, scale, out_dtype=jnp.bfloat16):
    BS, three_h = qkv.shape
    H = three_h // 3
    B, S = maskf.shape
    assert H == heads * head_dim and BS == B * S
    return pl.pallas_call(
        functools.partial(_attention_kernel, scale=scale, heads=heads,
                          dh=head_dim),
        out_shape=jax.ShapeDtypeStruct((BS, H), out_dtype),
        grid=(B,),
        in_specs=[
            pl.BlockSpec((1, S), lambda b: (b, 0)),        # mask row (tiny)
            pl.BlockSpec((S, H), lambda b: (b, 0)),        # Q columns of QKV
            pl.BlockSpec((S, H), lambda b: (b, 1)),        # K columns
            pl.BlockSpec((S, H), lambda b: (b, 2)),        # V columns
        ],
        out_specs=pl.BlockSpec((S, H), lambda b: (b, 0)),
        compiler_params=pltpu.CompilerParams(
            dimension_semantics=("parallel",)),
    )(maskf, qkv, qkv, qkv)


# ----------------------------------------------------------------------------
# fused BERT pooler (tanh dense on [CLS]) + classifier head (ReLU), tiled over
# batch rows ("parallel"); classifier weight padded to 128 output lanes so the
# final store is lane-dense; logits sliced to 15 by the caller.
# ----------------------------------------------------------------------------
def _pool_cls_kernel(x_ref, pw_ref, pb_ref, cw_ref, cb_ref, o_ref):
    pooled = jnp.dot(x_ref[...], pw_ref[...],
                     preferred_element_type=jnp.float32)
    pooled = jnp.tanh(pooled + pb_ref[...])
    logits = jnp.dot(pooled.astype(cw_ref.dtype), cw_ref[...],
                     preferred_element_type=jnp.float32)
    o_ref[...] = jnp.maximum(logits + cb_ref[...], 0.0)


def pooler_classifier(cls, pool_w, pool_b, cls_w_pad, cls_b_pad):
    B, H = cls.shape
    Np = cls_w_pad.shape[1]                                # 128 padded lanes
    tb = _tile(B, (256, 128, 64, 32, 16, 8, 4, 2, 1))
    return pl.pallas_call(
        _pool_cls_kernel,
        out_shape=jax.ShapeDtypeStruct((B, Np), jnp.float32),
        grid=(B // tb,),
        in_specs=[
            pl.BlockSpec((tb, H), lambda i: (i, 0)),
            pl.BlockSpec((H, H), lambda i: (0, 0)),        # constant -> 1 DMA
            pl.BlockSpec((1, H), lambda i: (0, 0)),
            pl.BlockSpec((H, Np), lambda i: (0, 0)),
            pl.BlockSpec((1, Np), lambda i: (0, 0)),
        ],
        out_specs=pl.BlockSpec((tb, Np), lambda i: (i, 0)),
        compiler_params=pltpu.CompilerParams(
            dimension_semantics=("parallel",)),
    )(cls, pool_w, pool_b.reshape(1, H), cls_w_pad, cls_b_pad.reshape(1, Np))


# ----------------------------------------------------------------------------
# Synthetic deterministic parameters (BERT-base shapes + Linear(768, 15))
# Matmul weights are stored bf16; biases / LN params / embeddings in f32.
# ----------------------------------------------------------------------------
def init_params(key, cfg):
    H, I, L = cfg["hidden"], cfg["intermediate"], cfg["labels"]

    def nrm(k, shape, dtype=jnp.bfloat16):
        return (jax.random.normal(k, shape, dtype=jnp.float32) * 0.02).astype(dtype)

    keys = iter(jax.random.split(key, 8 + 8 * cfg["layers"]))
    cls_w_real = nrm(next(keys), (H, L))
    params = {
        "word_emb": nrm(next(keys), (cfg["vocab"], H), jnp.float32),
        "pos_emb": nrm(next(keys), (cfg["max_pos"], H), jnp.float32),
        "type_emb": nrm(next(keys), (2, H), jnp.float32),
        "emb_ln_g": jnp.ones((H,), jnp.float32),
        "emb_ln_b": jnp.zeros((H,), jnp.float32),
        "pool_w": nrm(next(keys), (H, H)),
        "pool_b": jnp.zeros((H,), jnp.float32),
        # classifier weight padded to 128 output lanes (first L cols are real)
        "cls_w_pad": jnp.zeros((H, 128), jnp.bfloat16).at[:, :L].set(cls_w_real),
        "cls_b_pad": jnp.zeros((128,), jnp.float32),
        "layers": [],
    }
    for _ in range(cfg["layers"]):
        kq, kk, kv, ko, ki, ko2 = (next(keys) for _ in range(6))
        w_qkv = jnp.concatenate(
            [nrm(kq, (H, H)), nrm(kk, (H, H)), nrm(kv, (H, H))], axis=1)
        params["layers"].append({
            "w_qkv": w_qkv, "b_qkv": jnp.zeros((3 * H,), jnp.float32),
            "wo": nrm(ko, (H, H)), "bo": jnp.zeros((H,), jnp.float32),
            "ln1_g": jnp.ones((H,), jnp.float32),
            "ln1_b": jnp.zeros((H,), jnp.float32),
            "wi": nrm(ki, (H, I)), "bi": jnp.zeros((I,), jnp.float32),
            "wo2": nrm(ko2, (I, H)), "bo2": jnp.zeros((H,), jnp.float32),
            "ln2_g": jnp.ones((H,), jnp.float32),
            "ln2_b": jnp.zeros((H,), jnp.float32),
        })
    return params


# ----------------------------------------------------------------------------
# Forward pass: BERT encoder -> pooler -> Linear(768, 15) -> ReLU
# ----------------------------------------------------------------------------
def bert_classifier_forward(params, input_ids, mask, cfg):
    B, S = input_ids.shape
    H = cfg["hidden"]
    Hh = cfg["heads"]
    Dh = H // Hh

    # --- embeddings (table gathers are plain-JAX glue) ---
    x = (params["word_emb"][input_ids]
         + params["pos_emb"][:S][None, :, :]
         + params["type_emb"][0][None, None, :])
    # bf16 into the mem-bound embedding LN (LN math is f32 in-kernel)
    x = x.reshape(B * S, H).astype(jnp.bfloat16)
    x = layernorm(x, params["emb_ln_g"], params["emb_ln_b"])          # bf16

    maskf = mask.astype(jnp.float32)                                  # (B, S)
    scale = 1.0 / math.sqrt(Dh)

    for layer in params["layers"]:
        # fused QKV projection: one (B*S,768) x (768,2304) weight-resident GEMM
        qkv = dense(x, layer["w_qkv"], layer["b_qkv"])
        # attention: all heads per batch step, mask bias built in-kernel
        ctx = attention(qkv, maskf, heads=Hh, head_dim=Dh, scale=scale)
        # attention output projection fused with residual-add + LayerNorm1
        h1 = dense_add_layernorm(ctx, layer["wo"], layer["bo"],
                                 x, layer["ln1_g"], layer["ln1_b"])
        # FFN up-projection with fused GELU
        ffn = dense(h1, layer["wi"], layer["bi"], act="gelu")
        # FFN down-projection (full-K resident weight) + residual + LayerNorm2
        x = dense_add_layernorm(ffn, layer["wo2"], layer["bo2"],
                                h1, layer["ln2_g"], layer["ln2_b"])

    # --- pooler ([CLS] -> dense -> tanh) + classifier (ReLU), one kernel ---
    cls = x.reshape(B, S, H)[:, 0, :]                                 # (B, 768)
    logits_pad = pooler_classifier(cls, params["pool_w"], params["pool_b"],
                                   params["cls_w_pad"], params["cls_b_pad"])
    return logits_pad[:, :cfg["labels"]]


# ----------------------------------------------------------------------------
if __name__ == "__main__":
    cfg = dict(hidden=768, heads=12, layers=2, intermediate=1536,
               vocab=128, max_pos=32, labels=15)

    key = jax.random.PRNGKey(0)
    pkey, ikey = jax.random.split(key)
    params = init_params(pkey, cfg)

    B, S = 2, 8
    input_ids = jax.random.randint(ikey, (B, S), 0, cfg["vocab"], dtype=jnp.int32)
    mask = jnp.ones((B, S), dtype=jnp.int32).at[1, 6:].set(0)  # second seq padded

    out = bert_classifier_forward(params, input_ids, mask, cfg)
    out = jax.block_until_ready(out)
    assert out.shape == (B, cfg["labels"]) and out.dtype == jnp.float32
    assert bool(jnp.all(out >= 0.0))  # ReLU output
    print("KERNEL_OK")
</pallas_src>

<mosaic_0001>
module attributes {stable_mosaic.version = 11 : i64} {
  func.func @_ln_kernel(%arg0: i32, %arg1: memref<16x768xbf16, #tpu.memory_space<vmem>>, %arg2: memref<1x768xf32, #tpu.memory_space<vmem>>, %arg3: memref<1x768xf32, #tpu.memory_space<vmem>>, %arg4: memref<16x768xbf16, #tpu.memory_space<vmem>>) attributes {dimension_semantics = [#tpu.dimension_semantics<parallel>], iteration_bounds = array<i64: 1>, scalar_prefetch = 0 : i64, scratch_operands = 0 : i64, tpu.core_type = #tpu.core_type<tc>, window_params = [{transform_indices = @transform_0, window_bounds = array<i64: 16, 768>}, {pipeline_mode = #tpu.pipeline_mode<synchronous>, transform_indices = @transform_1, window_bounds = array<i64: 1, 768>}, {pipeline_mode = #tpu.pipeline_mode<synchronous>, transform_indices = @transform_2, window_bounds = array<i64: 1, 768>}, {transform_indices = @transform_3, window_bounds = array<i64: 16, 768>}]} {
    %c0 = arith.constant 0 : index
    %c0_0 = arith.constant 0 : index
    %0 = vector.load %arg1[%c0, %c0_0] : memref<16x768xbf16, #tpu.memory_space<vmem>>, vector<16x768xbf16>
    %1 = arith.extf %0 : vector<16x768xbf16> to vector<16x768xf32>
    %cst = arith.constant dense<0.000000e+00> : vector<16xf32>
    %2 = vector.multi_reduction <add>, %1, %cst [1] : vector<16x768xf32> to vector<16xf32>
    %3 = vector.shape_cast %2 : vector<16xf32> to vector<16x1xf32>
    %cst_1 = arith.constant 7.680000e+02 : f32
    %4 = vector.broadcast %cst_1 : f32 to vector<16x1xf32>
    %5 = arith.divf %3, %4 : vector<16x1xf32>
    %6 = vector.broadcast %5 : vector<16x1xf32> to vector<16x768xf32>
    %7 = arith.subf %1, %6 : vector<16x768xf32>
    %8 = vector.broadcast %5 : vector<16x1xf32> to vector<16x768xf32>
    %9 = arith.subf %1, %8 : vector<16x768xf32>
    %10 = arith.mulf %7, %9 : vector<16x768xf32>
    %cst_2 = arith.constant dense<0.000000e+00> : vector<16xf32>
    %11 = vector.multi_reduction <add>, %10, %cst_2 [1] : vector<16x768xf32> to vector<16xf32>
    %12 = vector.shape_cast %11 : vector<16xf32> to vector<16x1xf32>
    %cst_3 = arith.constant 7.680000e+02 : f32
    %13 = vector.broadcast %cst_3 : f32 to vector<16x1xf32>
    %14 = arith.divf %12, %13 : vector<16x1xf32>
    %cst_4 = arith.constant 9.99999996E-13 : f32
    %15 = vector.broadcast %cst_4 : f32 to vector<16x1xf32>
    %16 = arith.addf %14, %15 : vector<16x1xf32>
    %17 = math.rsqrt %16 : vector<16x1xf32>
    %18 = vector.broadcast %5 : vector<16x1xf32> to vector<16x768xf32>
    %19 = arith.subf %1, %18 : vector<16x768xf32>
    %20 = vector.broadcast %17 : vector<16x1xf32> to vector<16x768xf32>
    %21 = arith.mulf %19, %20 : vector<16x768xf32>
    %c0_5 = arith.constant 0 : index
    %c0_6 = arith.constant 0 : index
    %22 = vector.load %arg2[%c0_5, %c0_6] : memref<1x768xf32, #tpu.memory_space<vmem>>, vector<1x768xf32>
    %23 = vector.broadcast %22 : vector<1x768xf32> to vector<16x768xf32>
    %24 = arith.mulf %21, %23 : vector<16x768xf32>
    %c0_7 = arith.constant 0 : index
    %c0_8 = arith.constant 0 : index
    %25 = vector.load %arg3[%c0_7, %c0_8] : memref<1x768xf32, #tpu.memory_space<vmem>>, vector<1x768xf32>
    %26 = vector.broadcast %25 : vector<1x768xf32> to vector<16x768xf32>
    %27 = arith.addf %24, %26 : vector<16x768xf32>
    %28 = arith.truncf %27 : vector<16x768xf32> to vector<16x768xbf16>
    %c0_9 = arith.constant 0 : index
    %c0_10 = arith.constant 0 : index
    %29 = vector.load %arg4[%c0_9, %c0_10] : memref<16x768xbf16, #tpu.memory_space<vmem>>, vector<16x768xbf16>
    tpu.vector_store %arg4[%c0_9, %c0_10], %28 {strides = array<i32>} : memref<16x768xbf16, #tpu.memory_space<vmem>>, vector<16x768xbf16>,
    return
  }
  func.func @transform_0(%arg0: i32) -> (i32, i32) {
    %c0_i32 = arith.constant 0 : i32
    %c0_i32_0 = arith.constant 0 : i32
    return %arg0, %c0_i32 : i32, i32
  }
  func.func @transform_1(%arg0: i32) -> (i32, i32) {
    %c0_i32 = arith.constant 0 : i32
    %c0_i32_0 = arith.constant 0 : i32
    %c0_i32_1 = arith.constant 0 : i32
    return %c0_i32, %c0_i32_0 : i32, i32
  }
  func.func @transform_2(%arg0: i32) -> (i32, i32) {
    %c0_i32 = arith.constant 0 : i32
    %c0_i32_0 = arith.constant 0 : i32
    %c0_i32_1 = arith.constant 0 : i32
    return %c0_i32, %c0_i32_0 : i32, i32
  }
  func.func @transform_3(%arg0: i32) -> (i32, i32) {
    %c0_i32 = arith.constant 0 : i32
    %c0_i32_0 = arith.constant 0 : i32
    return %arg0, %c0_i32 : i32, i32
  }
}

</mosaic_0001>

<llo_original>
// kernel: tpu_custom_call.1
$region0: #{tpu_custom_call.1}
  #allocation0 [shape = 'u32[]', space=smem, size = 0x4, offset = 0x4, fixed_abs, tag = 'smem constant byte address 0x4 - core index']
  #allocation1 [shape = 'u32[144,128]{1,0:T(1,128)}', space=vmem, size = 0x12000, scoped, tag = 'internal scratch']
  %s0 = inlined_call_operand.hbm [shape: bf16[16,768], index: 0, kind: input, shape index: {}]
  %s1 = inlined_call_operand.hbm [shape: f32[1,768], index: 1, kind: input, shape index: {}]
  %s2 = inlined_call_operand.vmem [shape: f32[1,768], index: 2, kind: input, shape index: {}]
  %s3 = inlined_call_operand.hbm [shape: bf16[16,768], index: 3, kind: output, shape index: {}]
  %s4 = sld [smem:[#allocation0]]
  $region30: #{tpu_custom_call.1} parent=0
    _
  %s6 = ssub.s32 1, %s4
  %s7 = scalar_select 0, %s6, %s4
  $region1: #{tpu_custom_call.1} parent=0
    #allocation2 [shape = 'u8[24576]{0}', space=vmem, size = 0x6000, scoped, tag = 'input window, operand 0, single buffered']
    #allocation3 [shape = 's32[1]{0}', space=sflag, size = 0x4, scoped, tag = 'scoped memory for tpu_custom_call.1']
    #allocation4 [shape = 's32[1]{0}', space=sflag, size = 0x4, scoped, tag = 'scoped memory for tpu_custom_call.1']
    #allocation5 [shape = 'u8[3072]{0}', space=vmem, size = 0xc00, scoped, tag = 'input window, operand 1, single buffered']
    #allocation6 [shape = 's32[1]{0}', space=sflag, size = 0x4, scoped, tag = 'scoped memory for tpu_custom_call.1']
    #allocation7 [shape = 'u8[24576]{0}', space=vmem, size = 0x6000, scoped, tag = 'output window, operand 0, single buffered']
    %8 = vsyncpa [#allocation3], 0
    %9 = vsyncpa [#allocation6], 0
    %10 = vsyncpa [#allocation4], 0
    // Predicated region
    $region2: #{tpu_custom_call.1} parent=1 // pred_check
      _
    $region3: #{tpu_custom_call.1} parent=1 // pred_check_branch
      %12 = sbr.rel (0) target = $region5
    $region4: #{tpu_custom_call.1} parent=1 // pred_region
      %s14 = ssub.s32 768, 768
      %15 = vsyncadd [#allocation3], %s14
      %s16 = sshll.u32 [#allocation2], 4
      %s17 = int_to_ptr.vmem [resolvable:$true] %s16
      %22 = dma.hbm_to_vmem [thread:$0]  %s0, 768, %s17, [#allocation3], 384, 384, 24
    $region5: #{tpu_custom_call.1} parent=1 // pred_fallthru
      _
    // Predicated region
    $region6: #{tpu_custom_call.1} parent=1 // pred_check
      _
    $region7: #{tpu_custom_call.1} parent=1 // pred_check_branch
      %24 = sbr.rel (0) target = $region9
    $region8: #{tpu_custom_call.1} parent=1 // pred_region
      %s26 = ssub.s32 96, 96
      %27 = vsyncadd [#allocation6], %s26
      %s29 = sshll.u32 [#allocation5], 4
      %s30 = int_to_ptr.vmem [resolvable:$true] %s29
      %32 = dma.hbm_to_vmem [thread:$0]  %s1, 96, %s30, [#allocation6]
    $region9: #{tpu_custom_call.1} parent=1 // pred_fallthru
      _
    // Predicated region
    $region10: #{tpu_custom_call.1} parent=1 // pred_check
      _
    $region11: #{tpu_custom_call.1} parent=1 // pred_check_branch
      %34 = sbr.rel (0) target = $region13
    $region12: #{tpu_custom_call.1} parent=1 // pred_region
      _
    $region13: #{tpu_custom_call.1} parent=1 // pred_fallthru
      _
    // Predicated region
    $region14: #{tpu_custom_call.1} parent=1 // pred_check
      _
    $region15: #{tpu_custom_call.1} parent=1 // pred_check_branch
      %36 = sbr.rel (0) target = $region17
    $region16: #{tpu_custom_call.1} parent=1 // pred_region
      %37 = dma.done [#allocation3], 768
    $region17: #{tpu_custom_call.1} parent=1 // pred_fallthru
      _
    // Predicated region
    $region18: #{tpu_custom_call.1} parent=1 // pred_check
      _
    $region19: #{tpu_custom_call.1} parent=1 // pred_check_branch
      %39 = sbr.rel (0) target = $region21
    $region20: #{tpu_custom_call.1} parent=1 // pred_region
      %40 = dma.done [#allocation6], 96
    $region21: #{tpu_custom_call.1} parent=1 // pred_fallthru
      _
    %v41 = vld [vmem:[#allocation2] sm:$0xff]
    %v42 = vld [vmem:[#allocation2 + $0x8] sm:$0xff]
    %v43 = vld [vmem:[#allocation2 + $0x10] sm:$0xff]
    %v44 = vld [vmem:[#allocation2 + $0x18] sm:$0xff]
    %v45 = vld [vmem:[#allocation2 + $0x20] sm:$0xff]
    %v46 = vld [vmem:[#allocation2 + $0x28] sm:$0xff]
    %v47 = vunpack.c.l.bf16 %v41
    %v48 = vunpack.c.h.bf16 %v41
    %v49 = vunpack.c.l.bf16 %v42
    %v50 = vunpack.c.h.bf16 %v42
    %v51 = vunpack.c.l.bf16 %v43
    %v52 = vunpack.c.h.bf16 %v43
    %v53 = vunpack.c.l.bf16 %v44
    %v54 = vunpack.c.h.bf16 %v44
    %v55 = vunpack.c.l.bf16 %v45
    %v56 = vunpack.c.h.bf16 %v45
    %v57 = vunpack.c.l.bf16 %v46
    %v58 = vunpack.c.h.bf16 %v46
    %v59 = vadd.f32 %v47, %v48
    %v60 = vadd.f32 %v59, %v49
    %v61 = vadd.f32 %v60, %v50
    %v62 = vadd.f32 %v61, %v51
    %v63 = vadd.f32 %v62, %v52
    %64 = vadd.xlane.f32.xlu0 %v63
    %v65 = vpop.xlane.xlu0 %64
    %v66 = vadd.f32 %v53, %v54
    %v67 = vadd.f32 %v66, %v55
    %v68 = vadd.f32 %v67, %v56
    %v69 = vadd.f32 %v68, %v57
    %v70 = vadd.f32 %v69, %v58
    %71 = vadd.xlane.f32.xlu0 %v70
    %v72 = vpop.xlane.xlu0 %71
    %v73 = vrcp.pop 768.0
    %v74 = vmul.f32 %v65, %v73
    %v75 = vmul.f32 %v72, %v73
    %v76 = vsub.f32 %v47, %v74
    %v77 = vsub.f32 %v48, %v74
    %v78 = vsub.f32 %v49, %v74
    %v79 = vsub.f32 %v50, %v74
    %v80 = vsub.f32 %v51, %v74
    %v81 = vsub.f32 %v52, %v74
    %v82 = vsub.f32 %v53, %v75
    %v83 = vsub.f32 %v54, %v75
    %v84 = vsub.f32 %v55, %v75
    %v85 = vsub.f32 %v56, %v75
    %v86 = vsub.f32 %v57, %v75
    %v87 = vsub.f32 %v58, %v75
    %v88 = vmul.f32 %v76, %v76
    %v89 = vmul.f32 %v77, %v77
    %v90 = vmul.f32 %v78, %v78
    %v91 = vmul.f32 %v79, %v79
    %v92 = vmul.f32 %v80, %v80
    %v93 = vmul.f32 %v81, %v81
    %v94 = vmul.f32 %v82, %v82
    %v95 = vmul.f32 %v83, %v83
    %v96 = vmul.f32 %v84, %v84
    %v97 = vmul.f32 %v85, %v85
    %v98 = vmul.f32 %v86, %v86
    %v99 = vmul.f32 %v87, %v87
    %v100 = vadd.f32 %v88, %v89
    %v101 = vadd.f32 %v100, %v90
    %v102 = vadd.f32 %v101, %v91
    %v103 = vadd.f32 %v102, %v92
    %v104 = vadd.f32 %v103, %v93
    %105 = vadd.xlane.f32.xlu0 %v104
    %v106 = vpop.xlane.xlu0 %105
    %v107 = vadd.f32 %v94, %v95
    %v108 = vadd.f32 %v107, %v96
    %v109 = vadd.f32 %v108, %v97
    %v110 = vadd.f32 %v109, %v98
    %v111 = vadd.f32 %v110, %v99
    %112 = vadd.xlane.f32.xlu0 %v111
    %v113 = vpop.xlane.xlu0 %112
    %v114 = vmul.f32 %v106, %v73
    %v115 = vmul.f32 %v113, %v73
    %v116 = vadd.f32 %v114, 1e-12
    %v117 = vadd.f32 %v115, 1e-12
    %v118 = vrsqrt.pop %v116
    %v119 = vrsqrt.pop %v117
    %v120 = vmul.f32 %v76, %v118
    %v121 = vmul.f32 %v77, %v118
    %v122 = vmul.f32 %v78, %v118
    %v123 = vmul.f32 %v79, %v118
    %v124 = vmul.f32 %v80, %v118
    %v125 = vmul.f32 %v81, %v118
    %v126 = vmul.f32 %v82, %v119
    %v127 = vmul.f32 %v83, %v119
    %v128 = vmul.f32 %v84, %v119
    %v129 = vmul.f32 %v85, %v119
    %v130 = vmul.f32 %v86, %v119
    %v131 = vmul.f32 %v87, %v119
    %v132 = vld [vmem:[#allocation5] sm:$0x3f]
    %v134 = vlaneseq
    %v135 = vshrl.u32 %v134, 7
    %v136 = vsub.s32 0, %v135
    %v137 = vrot.slane %v132, %v136
    %v138 = vlaneseq
    %v139 = vshrl.u32 %v138, 7
    %v140 = vsub.s32 1, %v139
    %v141 = vrot.slane %v132, %v140
    %v142 = vlaneseq
    %v143 = vshrl.u32 %v142, 7
    %v144 = vsub.s32 2, %v143
    %v145 = vrot.slane %v132, %v144
    %v146 = vlaneseq
    %v147 = vshrl.u32 %v146, 7
    %v148 = vsub.s32 3, %v147
    %v149 = vrot.slane %v132, %v148
    %v150 = vlaneseq
    %v151 = vshrl.u32 %v150, 7
    %v152 = vsub.s32 4, %v151
    %v153 = vrot.slane %v132, %v152
    %v154 = vlaneseq
    %v155 = vshrl.u32 %v154, 7
    %v156 = vsub.s32 5, %v155
    %v157 = vrot.slane %v132, %v156
    %v164 = vmul.f32 %v120, %v137
    %v165 = vmul.f32 %v121, %v141
    %v166 = vmul.f32 %v122, %v145
    %v167 = vmul.f32 %v123, %v149
    %v168 = vmul.f32 %v124, %v153
    %v169 = vmul.f32 %v125, %v157
    %v170 = vmul.f32 %v126, %v137
    %v171 = vmul.f32 %v127, %v141
    %v172 = vmul.f32 %v128, %v145
    %v173 = vmul.f32 %v129, %v149
    %v174 = vmul.f32 %v130, %v153
    %v175 = vmul.f32 %v131, %v157
    %v176 = vld [vmem:[%s2] sm:$0x3f]
    %v178 = vlaneseq
    %v179 = vshrl.u32 %v178, 7
    %v180 = vsub.s32 0, %v179
    %v181 = vrot.slane %v176, %v180
    %v182 = vlaneseq
    %v183 = vshrl.u32 %v182, 7
    %v184 = vsub.s32 1, %v183
    %v185 = vrot.slane %v176, %v184
    %v186 = vlaneseq
    %v187 = vshrl.u32 %v186, 7
    %v188 = vsub.s32 2, %v187
    %v189 = vrot.slane %v176, %v188
    %v190 = vlaneseq
    %v191 = vshrl.u32 %v190, 7
    %v192 = vsub.s32 3, %v191
    %v193 = vrot.slane %v176, %v192
    %v194 = vlaneseq
    %v195 = vshrl.u32 %v194, 7
    %v196 = vsub.s32 4, %v195
    %v197 = vrot.slane %v176, %v196
    %v198 = vlaneseq
    %v199 = vshrl.u32 %v198, 7
    %v200 = vsub.s32 5, %v199
    %v201 = vrot.slane %v176, %v200
    %v208 = vadd.f32 %v164, %v181
    %v209 = vadd.f32 %v165, %v185
    %v210 = vadd.f32 %v166, %v189
    %v211 = vadd.f32 %v167, %v193
    %v212 = vadd.f32 %v168, %v197
    %v213 = vadd.f32 %v169, %v201
    %v214 = vadd.f32 %v170, %v181
    %v215 = vadd.f32 %v171, %v185
    %v216 = vadd.f32 %v172, %v189
    %v217 = vadd.f32 %v173, %v193
    %v218 = vadd.f32 %v174, %v197
    %v219 = vadd.f32 %v175, %v201
    %v220 = vpack.c.bf16 %v214, %v208
    %v221 = vpack.c.bf16 %v215, %v209
    %v222 = vpack.c.bf16 %v216, %v210
    %v223 = vpack.c.bf16 %v217, %v211
    %v224 = vpack.c.bf16 %v218, %v212
    %v225 = vpack.c.bf16 %v219, %v213
    %v232 = vunpack.c.l.b16 %v220
    %v233 = vunpack.c.l.b16 %v221
    %v234 = vunpack.c.l.b16 %v222
    %v235 = vunpack.c.l.b16 %v223
    %v236 = vunpack.c.l.b16 %v224
    %v237 = vunpack.c.l.b16 %v225
    %v238 = vunpack.c.h.b16 %v220
    %v239 = vunpack.c.h.b16 %v221
    %v240 = vunpack.c.h.b16 %v222
    %v241 = vunpack.c.h.b16 %v223
    %v242 = vunpack.c.h.b16 %v224
    %v243 = vunpack.c.h.b16 %v225
    %v244 = vpack.c.b16 %v233, %v232
    %v245 = vpack.c.b16 %v235, %v234
    %v246 = vpack.c.b16 %v237, %v236
    %v247 = vpack.c.b16 %v239, %v238
    %v248 = vpack.c.b16 %v241, %v240
    %v249 = vpack.c.b16 %v243, %v242
    %256 = vst [vmem:[#allocation7] sm:$0xff] %v244
    %257 = vst [vmem:[#allocation7 + $0x8] sm:$0xff] %v245
    %258 = vst [vmem:[#allocation7 + $0x10] sm:$0xff] %v246
    %259 = vst [vmem:[#allocation7 + $0x18] sm:$0xff] %v247
    %260 = vst [vmem:[#allocation7 + $0x20] sm:$0xff] %v248
    %261 = vst [vmem:[#allocation7 + $0x28] sm:$0xff] %v249
    // Predicated region
    $region22: #{tpu_custom_call.1} parent=1 // pred_check
      _
    $region23: #{tpu_custom_call.1} parent=1 // pred_check_branch
      %263 = sbr.rel (0) target = $region25
    $region24: #{tpu_custom_call.1} parent=1 // pred_region
      %s265 = ssub.s32 768, 768
      %266 = vsyncadd [#allocation4], %s265
      %s267 = sshll.u32 [#allocation7], 4
      %s268 = int_to_ptr.vmem [resolvable:$true] %s267
      %273 = dma.vmem_to_hbm [thread:$0]  %s268, 768, %s3, [#allocation4], 384, 384, 24
    $region25: #{tpu_custom_call.1} parent=1 // pred_fallthru
      _
    // Predicated region
    $region26: #{tpu_custom_call.1} parent=1 // pred_check
      _
    $region27: #{tpu_custom_call.1} parent=1 // pred_check_branch
      %275 = sbr.rel (0) target = $region29
    $region28: #{tpu_custom_call.1} parent=1 // pred_region
      %276 = dma.done [#allocation4], 768
    $region29: #{tpu_custom_call.1} parent=1 // pred_fallthru
      _
    %277 = vsyncpa [#allocation3], 1
    %278 = vsyncpa [#allocation6], 1
    %279 = vsyncpa [#allocation4], 1

</llo_original>
